<compile_context>
chip_gen: v7x
topology: tpu7x:2x2x1
jax: 0.10.0
libtpu: 0.0.40
codegen_flags: <defaults>
</compile_context>

<pallas_src>
from functools import partial

import jax
import jax.numpy as jnp
from jax.experimental import pallas as pl
from jax.experimental.pallas import tpu as pltpu

_MIB = 1024 * 1024


def _round_up(v, m):
    return -(-v // m) * m


def _resident_spec(block_shape):
    """BlockSpec for an operand whose block index never changes.

    Request single-buffering (it is fetched exactly once); gracefully fall
    back to the default double-buffered spec on older JAX. Returns
    (spec, buffer_count) so VMEM accounting matches what is really allocated.
    """
    index_map = lambda i: (0, 0)
    try:
        return pl.BlockSpec(block_shape, index_map,
                            pipeline_mode=pl.Buffered(1)), 1
    except Exception:
        return pl.BlockSpec(block_shape, index_map), 2


def _vmem_info():
    """(vmem_capacity_bytes, multi_core) with a conservative fallback."""
    try:
        cap = int(pltpu.get_tpu_info().vmem_capacity_bytes)
        # v7x: 64 MiB VMEM per TensorCore, 2 TCs share the grid.
        # v5e/v6e: 128 MiB, single TC.
        return cap, cap < 100 * _MIB
    except Exception:
        return 64 * _MIB, False


def _patch_embed_kernel(x_ref, w_ref, b_ref, o_ref):
    # x_ref: (TILE_M, K_pad)  patch rows
    # w_ref: (K_pad, D_pad)   pre-transposed projection weight (NN contraction)
    # b_ref: (1, D_pad)       bias, f32
    # o_ref: (TILE_M, D_pad)
    acc = jnp.dot(x_ref[...], w_ref[...], preferred_element_type=jnp.float32)
    o_ref[...] = (acc + b_ref[...]).astype(o_ref.dtype)


@partial(jax.jit, static_argnames=("patch_size", "compute_dtype", "out_dtype",
                                   "tile_m_target"))
def patch_embedding(x, weight, bias, patch_size, compute_dtype=None,
                    out_dtype=None, tile_m_target=2048):
    """x: (B, C, H, W) NCHW. weight: (d_model, C, p, p). bias: (d_model,).

    Returns (B, (H//p)*(W//p), d_model) == proj(x).flatten(2).transpose(1, 2).
    """
    B, C, H, W = x.shape
    p = patch_size
    d_model = weight.shape[0]
    gh, gw = H // p, W // p
    num_patches = gh * gw

    M = B * num_patches
    K = C * p * p
    D = d_model

    in_dtype = x.dtype if compute_dtype is None else jnp.dtype(compute_dtype)
    o_dtype = x.dtype if out_dtype is None else jnp.dtype(out_dtype)
    in_item = jnp.dtype(in_dtype).itemsize
    out_item = jnp.dtype(o_dtype).itemsize

    # Lane-pad contraction / feature dims: (8,128)-legal blocks + lane-dense
    # output stores. D_pad == D for typical ViT d_model (multiples of 128).
    K_pad = _round_up(K, 128)
    D_pad = _round_up(D, 128)

    # ---------------- generation-aware tile sizing ----------------
    vmem_cap, multi_core = _vmem_info()
    vmem_budget = int(vmem_cap * 0.65)     # ~41 MiB on v7x, ~83 MiB on v5e/v6e

    # Resident (constant-index) operand specs first so the VMEM accounting
    # uses their actual buffer counts (1 if single-buffering is supported).
    w_spec, w_bufs = _resident_spec((K_pad, D_pad))
    b_spec, b_bufs = _resident_spec((1, D_pad))

    resident = w_bufs * K_pad * D_pad * in_item + b_bufs * D_pad * 4
    per_row = 2 * (K_pad * in_item + D_pad * out_item)   # streamed x + out (2x buffered)
    budget_rows = max(8, (vmem_budget - resident) // per_row)

    tile_m = max(8, min(tile_m_target, M, budget_rows))
    if tile_m >= 128:
        tile_m = (tile_m // 128) * 128     # 128-row alignment works on all gens (incl. v5e)
    else:
        tile_m = _round_up(tile_m, 8)      # sublane aligned
    if multi_core and M >= 16:
        # v7x: both TensorCores split the grid -> guarantee >= 2 (even) steps
        # so neither core sits idle and there is no load-imbalance tail.
        steps = pl.cdiv(M, tile_m)
        if steps < 2 or steps % 2:
            steps = max(2, steps + (steps % 2))
            tile_m = max(8, _round_up(pl.cdiv(M, steps), 8))

    grid = (pl.cdiv(M, tile_m),)           # ragged last block is masked by Pallas

    # ---------------- patchify glue (fused into the operand fetch) ----------
    # Cast first (if requested) so any materialized intermediate is half-size.
    # TODO(synk): confirm in an HLO/xprof dump that allow_input_fusion fuses
    # this reshape/transpose/pad chain; if not, fold the permutation into the
    # (tiny) weight instead of the patches.
    xs = x.astype(in_dtype) if compute_dtype is not None else x
    patches = xs.reshape(B, C, gh, p, gw, p)
    patches = patches.transpose(0, 2, 4, 1, 3, 5)        # (B, gh, gw, C, p, p)
    patches = patches.reshape(M, K)                      # (M, K), (c, i, j) order

    # One-time transpose of the small (D, K) weight -> (K, D): kernel runs a
    # plain NN contraction, no per-step MXU/XLU relayout of the weight.
    w_mat = weight.reshape(D, K).astype(in_dtype).T      # (K, D)
    b_mat = bias.reshape(1, D).astype(jnp.float32)

    if K_pad != K:
        patches = jnp.pad(patches, ((0, 0), (0, K_pad - K)))
        w_mat = jnp.pad(w_mat, ((0, K_pad - K), (0, 0)))
    if D_pad != D:
        w_mat = jnp.pad(w_mat, ((0, 0), (0, D_pad - D)))
        b_mat = jnp.pad(b_mat, ((0, 0), (0, D_pad - D)))

    cost = pl.CostEstimate(
        flops=2 * M * K_pad * D_pad,
        transcendentals=0,
        bytes_accessed=(M * K_pad * in_item + K_pad * D_pad * in_item
                        + M * D_pad * out_item + D_pad * 4),
    )

    needed = resident + tile_m * per_row + 4 * _MIB
    vmem_limit = int(min(vmem_cap - 2 * _MIB,
                         max(vmem_budget + 8 * _MIB, needed)))

    out = pl.pallas_call(
        _patch_embed_kernel,
        out_shape=jax.ShapeDtypeStruct((M, D_pad), o_dtype),
        grid_spec=pltpu.PrefetchScalarGridSpec(
            num_scalar_prefetch=0,
            grid=grid,
            in_specs=[
                pl.BlockSpec((tile_m, K_pad), lambda i: (i, 0)),  # streamed M tiles
                w_spec,                                           # resident weight
                b_spec,                                           # resident bias
            ],
            out_specs=pl.BlockSpec((tile_m, D_pad), lambda i: (i, 0)),
        ),
        compiler_params=pltpu.CompilerParams(
            dimension_semantics=("parallel",),         # megacore-shardable (v7x)
            allow_input_fusion=[True, False, False],   # fuse patchify into the fetch
            vmem_limit_bytes=vmem_limit,
        ),
        cost_estimate=cost,
    )(patches, w_mat, b_mat)

    if D_pad != D:
        out = out[:, :D]
    return out.reshape(B, num_patches, d_model)


if __name__ == "__main__":
    # Small shapes consistent with the module: img_size=16, patch_size=4,
    # in_channels=4, d_model=32  ->  seq_len = (16//4)**2 = 16.
    B, C, H, W = 2, 4, 16, 16
    patch_size = 4
    d_model = 32

    key = jax.random.PRNGKey(0)
    kx, kw, kb = jax.random.split(key, 3)

    x = jax.random.normal(kx, (B, C, H, W), dtype=jnp.float32)
    # Parameter shapes match nn.Conv2d(C, d_model, patch_size, patch_size).
    weight = jax.random.normal(kw, (d_model, C, patch_size, patch_size),
                               dtype=jnp.float32) * 0.02
    bias = jax.random.normal(kb, (d_model,), dtype=jnp.float32) * 0.02

    # Reference: plain XLA conv path (same math as the PyTorch module).
    ref = jax.lax.conv_general_dilated(
        x, weight, window_strides=(patch_size, patch_size), padding="VALID",
        dimension_numbers=("NCHW", "OIHW", "NCHW"))
    ref = ref + bias[None, :, None, None]
    ref = ref.reshape(B, d_model, -1).transpose(0, 2, 1)

    # f32 path (exact vs. reference).
    out = patch_embedding(x, weight, bias, patch_size=patch_size)
    out = jax.block_until_ready(out)
    assert out.shape == (B, (H // patch_size) * (W // patch_size), d_model)
    assert out.dtype == x.dtype
    assert jnp.allclose(out, ref, atol=1e-4, rtol=1e-4)

    # bf16 MXU compute (f32 accumulation), f32 writeback.
    out_bf = patch_embedding(x, weight, bias, patch_size=patch_size,
                             compute_dtype=jnp.bfloat16)
    out_bf = jax.block_until_ready(out_bf)
    assert jnp.allclose(out_bf, ref, atol=2e-2, rtol=2e-2)

    # bf16 compute + bf16 writeback (production setting for this HBM-bound op).
    out_bb = patch_embedding(x, weight, bias, patch_size=patch_size,
                             compute_dtype=jnp.bfloat16, out_dtype=jnp.bfloat16)
    out_bb = jax.block_until_ready(out_bb)
    assert out_bb.dtype == jnp.bfloat16
    assert jnp.allclose(out_bb.astype(jnp.float32), ref, atol=3e-2, rtol=3e-2)

    print("KERNEL_OK")
</pallas_src>

<mosaic_0001>
module attributes {stable_mosaic.version = 11 : i64} {
  func.func @_patch_embed_kernel(%arg0: i32, %arg1: memref<32x128xf32, #tpu.memory_space<vmem>>, %arg2: memref<128x128xf32, #tpu.memory_space<vmem>>, %arg3: memref<1x128xf32, #tpu.memory_space<vmem>>, %arg4: memref<32x128xf32, #tpu.memory_space<vmem>>) attributes {dimension_semantics = [#tpu.dimension_semantics<parallel>], iteration_bounds = array<i64: 1>, scalar_prefetch = 0 : i64, scratch_operands = 0 : i64, tpu.core_type = #tpu.core_type<tc>, window_params = [{transform_indices = @transform_0, window_bounds = array<i64: 32, 128>}, {pipeline_mode = #tpu.pipeline_mode<synchronous>, transform_indices = @transform_1, window_bounds = array<i64: 128, 128>}, {pipeline_mode = #tpu.pipeline_mode<synchronous>, transform_indices = @transform_2, window_bounds = array<i64: 1, 128>}, {transform_indices = @transform_3, window_bounds = array<i64: 32, 128>}]} {
    %c0 = arith.constant 0 : index
    %c0_0 = arith.constant 0 : index
    %0 = vector.load %arg1[%c0, %c0_0] : memref<32x128xf32, #tpu.memory_space<vmem>>, vector<32x128xf32>
    %c0_1 = arith.constant 0 : index
    %c0_2 = arith.constant 0 : index
    %1 = vector.load %arg2[%c0_1, %c0_2] : memref<128x128xf32, #tpu.memory_space<vmem>>, vector<128x128xf32>
    %cst = arith.constant dense<0.000000e+00> : vector<32x128xf32>
    %2 = tpu.matmul %0, %1, %cst {dimension_numbers = #tpu.dot_dimension_numbers<[1], [0], [0], [1], [0, 0, 1, 1], [], []>} : vector<32x128xf32>, vector<128x128xf32>, vector<32x128xf32> -> vector<32x128xf32>
    %c0_3 = arith.constant 0 : index
    %c0_4 = arith.constant 0 : index
    %3 = vector.load %arg3[%c0_3, %c0_4] : memref<1x128xf32, #tpu.memory_space<vmem>>, vector<1x128xf32>
    %4 = vector.broadcast %3 : vector<1x128xf32> to vector<32x128xf32>
    %5 = arith.addf %2, %4 : vector<32x128xf32>
    %c0_5 = arith.constant 0 : index
    %c0_6 = arith.constant 0 : index
    %6 = vector.load %arg4[%c0_5, %c0_6] : memref<32x128xf32, #tpu.memory_space<vmem>>, vector<32x128xf32>
    tpu.vector_store %arg4[%c0_5, %c0_6], %5 {strides = array<i32>} : memref<32x128xf32, #tpu.memory_space<vmem>>, vector<32x128xf32>,
    return
  }
  func.func @transform_0(%arg0: i32) -> (i32, i32) {
    %c0_i32 = arith.constant 0 : i32
    %c0_i32_0 = arith.constant 0 : i32
    return %arg0, %c0_i32 : i32, i32
  }
  func.func @transform_1(%arg0: i32) -> (i32, i32) {
    %c0_i32 = arith.constant 0 : i32
    %c0_i32_0 = arith.constant 0 : i32
    %c0_i32_1 = arith.constant 0 : i32
    return %c0_i32, %c0_i32_0 : i32, i32
  }
  func.func @transform_2(%arg0: i32) -> (i32, i32) {
    %c0_i32 = arith.constant 0 : i32
    %c0_i32_0 = arith.constant 0 : i32
    %c0_i32_1 = arith.constant 0 : i32
    return %c0_i32, %c0_i32_0 : i32, i32
  }
  func.func @transform_3(%arg0: i32) -> (i32, i32) {
    %c0_i32 = arith.constant 0 : i32
    %c0_i32_0 = arith.constant 0 : i32
    return %arg0, %c0_i32 : i32, i32
  }
}

</mosaic_0001>

<llo_original>
// kernel: patch_embedding.2
$region0: #{patch_embedding.2}
  #allocation0 [shape = 'u32[]', space=smem, size = 0x4, offset = 0x4, fixed_abs, tag = 'smem constant byte address 0x4 - core index']
  #allocation1 [shape = 'u32[144,128]{1,0:T(1,128)}', space=vmem, size = 0x12000, scoped, tag = 'internal scratch']
  #allocation2 [shape = 'u32[2048]{0}', space=vmem, size = 0x2000, scoped, tag = 'scoped memory for patch_embedding.2']
  #allocation3 [shape = 'u32[2048]{0}', space=vmem, size = 0x2000, scoped, tag = 'scoped memory for patch_embedding.2']
  #allocation4 [shape = 'u32[2048]{0}', space=vmem, size = 0x2000, scoped, tag = 'scoped memory for patch_embedding.2']
  #allocation5 [shape = 'u32[2048]{0}', space=vmem, size = 0x2000, scoped, tag = 'scoped memory for patch_embedding.2']
  #allocation6 [shape = 'u32[2048]{0}', space=vmem, size = 0x2000, scoped, tag = 'scoped memory for patch_embedding.2']
  %s0 = inlined_call_operand.vmem [shape: f32[128,128], index: 0, kind: input, shape index: {}]
  %s1 = inlined_call_operand.vmem [shape: f32[1,128], index: 1, kind: input, shape index: {}]
  %s2 = inlined_call_operand.vmem [shape: f32[32,64], index: 2, kind: input, shape index: {}]
  %s3 = inlined_call_operand.<no memory space> [shape: f32[], index: 3, kind: input, shape index: {}]
  %s4 = inlined_call_operand.hbm [shape: f32[32,128], index: 4, kind: output, shape index: {}]
  %s5 = sld [smem:[#allocation0]]
  $region22: #{patch_embedding.2} parent=0
    _
  %s7 = ssub.s32 1, %s5
  %s8 = scalar_select 0, %s7, %s5
  %v9 = vstv %s3
  $region1: #{patch_embedding.2} parent=0
    #allocation7 [shape = 'u8[16384]{0}', space=vmem, size = 0x4000, scoped, tag = 'output window, operand 0, single buffered']
    #allocation8 [shape = 's32[1]{0}', space=sflag, size = 0x4, scoped, tag = 'scoped memory for patch_embedding.2']
    #allocation9 [shape = 'u8[16384]{0}', space=vmem, size = 0x4000, dematerialized = true, scoped, tag = 'FusionAdapter Buffer %fusion.1 = f32[32,128]{1,0:T(8,128)} fusion(%param_2.1, %param_3), kind=kLoop, calls=%fused_computation.2.clone, metadata={op_name="jit(patch_embedding)/jit(_pad)/pad" stack_frame_id=12}']
    %10 = vsyncpa [#allocation8], 0
    // Predicated region
    $region2: #{patch_embedding.2} parent=1 // pred_check
      _
    $region3: #{patch_embedding.2} parent=1 // pred_check_branch
      %12 = sbr.rel (0) target = $region5
    $region4: #{patch_embedding.2} parent=1 // pred_region
      _
    $region5: #{patch_embedding.2} parent=1 // pred_fallthru
      _
    // Predicated region
    $region6: #{patch_embedding.2} parent=1 // pred_check
      _
    $region7: #{patch_embedding.2} parent=1 // pred_check_branch
      %14 = sbr.rel (0) target = $region9
    $region8: #{patch_embedding.2} parent=1 // pred_region
      _
    $region9: #{patch_embedding.2} parent=1 // pred_fallthru
      _
    // Predicated region
    $region10: #{patch_embedding.2} parent=1 // pred_check
      _
    $region11: #{patch_embedding.2} parent=1 // pred_check_branch
      %16 = sbr.rel (0) target = $region13
    $region12: #{patch_embedding.2} parent=1 // pred_region
      _
    $region13: #{patch_embedding.2} parent=1 // pred_fallthru
      _
    %v17 = vld [vmem:[%s2] sm:$0xff]
    %v18 = vlaneseq
    %v19 = vand.u32 %v18, 127
    %vm21 = vcmp.lt.s32.totalorder %v19, 64
    %v22 = vsel %vm21, %v17, %v9
    %24 = vst [vmem:[#allocation9] sm:$0xff] %v22
    %s25 = scalar_lea.vmem %s2, 8
    %v26 = vld [vmem:[%s25] sm:$0xff]
    %v27 = vlaneseq
    %v28 = vand.u32 %v27, 127
    %vm30 = vcmp.lt.s32.totalorder %v28, 64
    %v31 = vsel %vm30, %v26, %v9
    %s32 = scalar_lea.vmem [#allocation9], 8
    %34 = vst [vmem:[%s32] sm:$0xff] %v31
    %s35 = scalar_lea.vmem %s2, 16
    %v36 = vld [vmem:[%s35] sm:$0xff]
    %v37 = vlaneseq
    %v38 = vand.u32 %v37, 127
    %vm40 = vcmp.lt.s32.totalorder %v38, 64
    %v41 = vsel %vm40, %v36, %v9
    %s42 = scalar_lea.vmem [#allocation9], 16
    %44 = vst [vmem:[%s42] sm:$0xff] %v41
    %s45 = scalar_lea.vmem %s2, 24
    %v46 = vld [vmem:[%s45] sm:$0xff]
    %v47 = vlaneseq
    %v48 = vand.u32 %v47, 127
    %vm50 = vcmp.lt.s32.totalorder %v48, 64
    %v51 = vsel %vm50, %v46, %v9
    %s52 = scalar_lea.vmem [#allocation9], 24
    %54 = vst [vmem:[%s52] sm:$0xff] %v51
    %v55 = vld [vmem:[#allocation9] sm:$0xff]
    %v56 = vld [vmem:[#allocation9 + $0x8] sm:$0xff]
    %v57 = vld [vmem:[#allocation9 + $0x10] sm:$0xff]
    %v58 = vld [vmem:[#allocation9 + $0x18] sm:$0xff]
    %v59 = vld [vmem:[%s0] sm:$0xff]
    %v60 = vld [vmem:[%s0 + $0x8] sm:$0xff]
    %v61 = vld [vmem:[%s0 + $0x10] sm:$0xff]
    %v62 = vld [vmem:[%s0 + $0x18] sm:$0xff]
    %v63 = vld [vmem:[%s0 + $0x20] sm:$0xff]
    %v64 = vld [vmem:[%s0 + $0x28] sm:$0xff]
    %v65 = vld [vmem:[%s0 + $0x30] sm:$0xff]
    %v66 = vld [vmem:[%s0 + $0x38] sm:$0xff]
    %v67 = vld [vmem:[%s0 + $0x40] sm:$0xff]
    %v68 = vld [vmem:[%s0 + $0x48] sm:$0xff]
    %v69 = vld [vmem:[%s0 + $0x50] sm:$0xff]
    %v70 = vld [vmem:[%s0 + $0x58] sm:$0xff]
    %v71 = vld [vmem:[%s0 + $0x60] sm:$0xff]
    %v72 = vld [vmem:[%s0 + $0x68] sm:$0xff]
    %v73 = vld [vmem:[%s0 + $0x70] sm:$0xff]
    %v74 = vld [vmem:[%s0 + $0x78] sm:$0xff]
    %v75 = vld [vmem:[%s1] sm:$0x1]
    %v77 = vlaneseq
    %v78 = vshrl.u32 %v77, 7
    %v79 = vsub.s32 0, %v78
    %v80 = vrot.slane %v75, %v79
    %82 = vmatprep.subr.mxu0 0.0
    %83 = vmatpush1.msra.mxu0 %v59
    %84 = vmatprep.subr.mxu0 0.0
    %85 = vmatpush1.msra.mxu0 %v60
    %86 = vmatprep.subr.mxu0 0.0
    %87 = vmatpush1.msra.mxu0 %v61
    %88 = vmatprep.subr.mxu0 0.0
    %89 = vmatpush1.msra.mxu0 %v62
    %90 = vmatprep.subr.mxu0 0.0
    %91 = vmatpush1.msra.mxu0 %v63
    %92 = vmatprep.subr.mxu0 0.0
    %93 = vmatpush1.msra.mxu0 %v64
    %94 = vmatprep.subr.mxu0 0.0
    %95 = vmatpush1.msra.mxu0 %v65
    %96 = vmatprep.subr.mxu0 0.0
    %97 = vmatpush1.msra.mxu0 %v66
    %98 = vmatprep.subr.mxu0 0.0
    %99 = vmatpush1.msra.mxu0 %v67
    %100 = vmatprep.subr.mxu0 0.0
    %101 = vmatpush1.msra.mxu0 %v68
    %102 = vmatprep.subr.mxu0 0.0
    %103 = vmatpush1.msra.mxu0 %v69
    %104 = vmatprep.subr.mxu0 0.0
    %105 = vmatpush1.msra.mxu0 %v70
    %106 = vmatprep.subr.mxu0 0.0
    %107 = vmatpush1.msra.mxu0 %v71
    %108 = vmatprep.subr.mxu0 0.0
    %109 = vmatpush1.msra.mxu0 %v72
    %110 = vmatprep.subr.mxu0 0.0
    %111 = vmatpush1.msra.mxu0 %v73
    %112 = vmatprep.subr.mxu0 0.0
    %113 = vmatpush1.msra.mxu0 %v74
    %114 = vmatprep.subr.mxu0 0.0
    %115 = vmatpush1.msra.mxu0 0.0
    %116 = vmatprep.subr.mxu0 0.0
    %117 = vmatpush1.msra.mxu0 0.0
    %118 = vmatprep.subr.mxu0 0.0
    %119 = vmatpush1.msra.mxu0 0.0
    %120 = vmatprep.subr.mxu0 0.0
    %121 = vmatpush1.msra.mxu0 0.0
    %122 = vmatprep.subr.mxu0 0.0
    %123 = vmatpush1.msra.mxu0 0.0
    %124 = vmatprep.subr.mxu0 0.0
    %125 = vmatpush1.msra.mxu0 0.0
    %126 = vmatprep.subr.mxu0 0.0
    %127 = vmatpush1.msra.mxu0 0.0
    %128 = vmatprep.subr.mxu0 0.0
    %129 = vmatpush1.msra.mxu0 0.0
    %130 = vmatprep.subr.mxu0 0.0
    %131 = vmatpush1.msra.mxu0 0.0
    %132 = vmatprep.subr.mxu0 0.0
    %133 = vmatpush1.msra.mxu0 0.0
    %134 = vmatprep.subr.mxu0 0.0
    %135 = vmatpush1.msra.mxu0 0.0
    %136 = vmatprep.subr.mxu0 0.0
    %137 = vmatpush1.msra.mxu0 0.0
    %138 = vmatprep.subr.mxu0 0.0
    %139 = vmatpush1.msra.mxu0 0.0
    %140 = vmatprep.subr.mxu0 0.0
    %141 = vmatpush1.msra.mxu0 0.0
    %142 = vmatprep.subr.mxu0 0.0
    %143 = vmatpush1.msra.mxu0 0.0
    %144 = vmatprep.subr.mxu0 0.0
    %145 = vmatpush1.msra.mxu0 0.0
    %146 = vmatprep.mubr.f32.mxu0 0.0
    %147 = vmatmul.mubr.f32.gmra.mrb[0].mxu0 %v55
    %v148 = vpop.f32.mrb[0].mxu0
    %v149 = vadd.f32 %v80, %v148
    %v150 = vpop.f32.mrb[0].mxu0
    %151 = vmatprep.mubr.f32.mxu0 0.0
    %152 = vmatmul.mubr.f32.gmra.mrb[0].mxu0 %v56
    %v153 = vpop.f32.mrb[0].mxu0
    %v154 = vadd.f32 %v80, %v153
    %v155 = vpop.f32.mrb[0].mxu0
    %156 = vmatprep.mubr.f32.mxu0 0.0
    %157 = vmatmul.mubr.f32.gmra.mrb[0].mxu0 %v57
    %v158 = vpop.f32.mrb[0].mxu0
    %v159 = vadd.f32 %v80, %v158
    %v160 = vpop.f32.mrb[0].mxu0
    %161 = vmatprep.mubr.f32.mxu0 0.0
    %162 = vmatmul.mubr.f32.gmra.mrb[0].mxu0 %v58
    %v163 = vpop.f32.mrb[0].mxu0
    %v164 = vadd.f32 %v80, %v163
    %v165 = vpop.f32.mrb[0].mxu0
    %166 = vdwg.mxu0
    %167 = vst [vmem:[#allocation7] sm:$0xff] %v149
    %168 = vst [vmem:[#allocation7 + $0x8] sm:$0xff] %v154
    %169 = vst [vmem:[#allocation7 + $0x10] sm:$0xff] %v159
    %170 = vst [vmem:[#allocation7 + $0x18] sm:$0xff] %v164
    // Predicated region
    $region14: #{patch_embedding.2} parent=1 // pred_check
      _
    $region15: #{patch_embedding.2} parent=1 // pred_check_branch
      %172 = sbr.rel (0) target = $region17
    $region16: #{patch_embedding.2} parent=1 // pred_region
      %s174 = ssub.s32 512, 512
      %175 = vsyncadd [#allocation8], %s174
      %s176 = sshll.u32 [#allocation7], 4
      %s177 = int_to_ptr.vmem [resolvable:$true] %s176
      %182 = dma.vmem_to_hbm [thread:$0]  %s177, 512, %s4, [#allocation8], 128, 128, 8
    $region17: #{patch_embedding.2} parent=1 // pred_fallthru
      _
    // Predicated region
    $region18: #{patch_embedding.2} parent=1 // pred_check
      _
    $region19: #{patch_embedding.2} parent=1 // pred_check_branch
      %184 = sbr.rel (0) target = $region21
    $region20: #{patch_embedding.2} parent=1 // pred_region
      %185 = dma.done [#allocation8], 512
    $region21: #{patch_embedding.2} parent=1 // pred_fallthru
      _
    %186 = vsyncpa [#allocation8], 1

</llo_original>
